<compile_context>
chip_gen: v5e
topology: v5e:2x2
jax: 0.10.0
libtpu: 0.0.40
codegen_flags: <defaults>
</compile_context>

<pallas_src>
import jax
import jax.numpy as jnp
from jax import lax
from jax.experimental import pallas as pl
from jax.experimental.pallas import tpu as pltpu


_VMEM_LIMIT = 32 * 1024 * 1024  # safe on every generation (<= v7x scoped VMEM)


def _rows_kernel(a_ref, x_ref, o_ref):
    # a_ref: (N, N) adjacency A[v, w];  x_ref / o_ref: (rows, N) with w last.
    # o = x @ A^T  (contract w with w) -> lane-dense N output columns.
    o_ref[...] = lax.dot_general(
        x_ref[...], a_ref[...],
        dimension_numbers=(((1,), (1,)), ((), ())),
        preferred_element_type=jnp.float32,
    ).astype(o_ref.dtype)


def _batched_rows_kernel(a_ref, x_ref, o_ref):
    # Per-timestep path.  a_ref: (Bt, N, N) = A[t, b, v, w];
    # x_ref / o_ref: (Bt, D, N).  o[b] = x[b] @ A[b]^T (batched over b).
    o_ref[...] = jnp.einsum(
        "bdw,bvw->bdv", x_ref[...], a_ref[...],
        preferred_element_type=jnp.float32,
    ).astype(o_ref.dtype)


def _choose_row_tile(m, n, itemsize):
    """Row tile: multiple of 8 (or full extent), block <= ~2 MiB, and split
    into >=2 tiles when easy so the parallel grid axis can feed 2 TCs (v7x)."""
    cap = (2 * 1024 * 1024) // max(1, n * itemsize)
    cap = max(8, (cap // 8) * 8)
    cap = min(cap, 1024)
    if m <= cap:
        if m >= 16 and m % 8 == 0:
            return max(8, ((m // 2 + 7) // 8) * 8)
        return m  # full-extent block (always legal)
    return cap


def _choose_batch_tile(b, n, itemsize):
    """Batch tile for the time-varying-A path: A block (bt, N, N) <= ~4 MiB."""
    cap = max(1, (4 * 1024 * 1024) // max(1, n * n * itemsize))
    return max(1, min(b, cap, 8))


def nconv(x, A):
    """Pallas equivalent of torch.einsum('bcwt,{vw|bvw|tbvw}->bcvt', x, A)."""
    B, D, N, T = x.shape
    dtype = x.dtype
    itemsize = jnp.dtype(dtype).itemsize
    flops = int(2 * B * D * N * N * T)
    io_bytes = int((2 * x.size + A.size) * itemsize)
    cost = pl.CostEstimate(flops=flops, transcendentals=0,
                           bytes_accessed=io_bytes)

    if A.ndim == 2:
        # Static adjacency: one big (B*D*T, N) @ A^T matmul, row-tiled.
        M = B * D * T
        xr = jnp.swapaxes(x, 2, 3).reshape(M, N)   # [B,D,T,N] -> [M,N], w last
        tm = _choose_row_tile(M, N, itemsize)
        out_r = pl.pallas_call(
            _rows_kernel,
            out_shape=jax.ShapeDtypeStruct((M, N), dtype),
            grid=(pl.cdiv(M, tm),),
            in_specs=[
                pl.BlockSpec((N, N), lambda i: (0, 0)),   # A resident in VMEM
                pl.BlockSpec((tm, N), lambda i: (i, 0)),
            ],
            out_specs=pl.BlockSpec((tm, N), lambda i: (i, 0)),
            compiler_params=pltpu.CompilerParams(
                dimension_semantics=("parallel",),
                vmem_limit_bytes=_VMEM_LIMIT,
            ),
            cost_estimate=cost,
        )(A, xr)
        return jnp.swapaxes(out_r.reshape(B, D, T, N), 2, 3)

    elif A.ndim == 3:
        # Per-batch adjacency [B, N, N]: grid (B, row_tiles); A[b] is fetched
        # once per b (inner row-tile axis keeps its block index constant).
        DT = D * T
        xr = jnp.swapaxes(x, 2, 3).reshape(B, DT, N)
        tm = _choose_row_tile(DT, N, itemsize)
        out_r = pl.pallas_call(
            _rows_kernel,
            out_shape=jax.ShapeDtypeStruct((B, DT, N), dtype),
            grid=(B, pl.cdiv(DT, tm)),
            in_specs=[
                pl.BlockSpec((None, N, N), lambda b, j: (b, 0, 0)),
                pl.BlockSpec((None, tm, N), lambda b, j: (b, j, 0)),
            ],
            out_specs=pl.BlockSpec((None, tm, N), lambda b, j: (b, j, 0)),
            compiler_params=pltpu.CompilerParams(
                dimension_semantics=("parallel", "parallel"),
                vmem_limit_bytes=_VMEM_LIMIT,
            ),
            cost_estimate=cost,
        )(A, xr)
        return jnp.swapaxes(out_r.reshape(B, D, T, N), 2, 3)

    else:
        # Per-timestep adjacency [T, B, N, N]: time-major layout, one batched
        # matmul over a batch tile per grid step, lane-dense N output.
        # TODO(synk): the trailing transpose back to [B, D, N, T] could be
        # removed entirely if the surrounding model kept a time-major layout.
        xt = jnp.transpose(x, (3, 0, 1, 2))        # [T, B, D, N]
        bt = _choose_batch_tile(B, N, itemsize)
        out_t = pl.pallas_call(
            _batched_rows_kernel,
            out_shape=jax.ShapeDtypeStruct((T, B, D, N), dtype),
            grid=(T, pl.cdiv(B, bt)),
            in_specs=[
                pl.BlockSpec((None, bt, N, N), lambda t, j: (t, j, 0, 0)),
                pl.BlockSpec((None, bt, D, N), lambda t, j: (t, j, 0, 0)),
            ],
            out_specs=pl.BlockSpec((None, bt, D, N), lambda t, j: (t, j, 0, 0)),
            compiler_params=pltpu.CompilerParams(
                dimension_semantics=("parallel", "parallel"),
                vmem_limit_bytes=_VMEM_LIMIT,
            ),
            cost_estimate=cost,
        )(A, xt)
        return jnp.transpose(out_t, (1, 2, 3, 0))  # back to [B, D, N, T]


if __name__ == "__main__":
    key = jax.random.PRNGKey(0)
    B, D, N, T = 2, 4, 16, 8
    kx, k2, k3, k4 = jax.random.split(key, 4)

    x = jax.random.normal(kx, (B, D, N, T), dtype=jnp.float32)
    A2 = jax.random.normal(k2, (N, N), dtype=jnp.float32)          # [N, N]
    A3 = jax.random.normal(k3, (B, N, N), dtype=jnp.float32)       # [B, N, N]
    A4 = jax.random.normal(k4, (T, B, N, N), dtype=jnp.float32)    # [T, B, N, N]

    out2 = jax.block_until_ready(nconv(x, A2))
    out3 = jax.block_until_ready(nconv(x, A3))
    out4 = jax.block_until_ready(nconv(x, A4))

    # Reference check against plain-JAX einsum (same semantics as torch.einsum).
    ref2 = jnp.einsum("bcwt,vw->bcvt", x, A2)
    ref3 = jnp.einsum("bcwt,bvw->bcvt", x, A3)
    ref4 = jnp.einsum("bcwt,tbvw->bcvt", x, A4)

    assert out2.shape == (B, D, N, T) and out2.dtype == x.dtype
    assert out3.shape == (B, D, N, T) and out4.shape == (B, D, N, T)
    assert jnp.allclose(out2, ref2, atol=1e-4, rtol=1e-4)
    assert jnp.allclose(out3, ref3, atol=1e-4, rtol=1e-4)
    assert jnp.allclose(out4, ref4, atol=1e-4, rtol=1e-4)

    print("KERNEL_OK")
</pallas_src>

<mosaic_0001>
module attributes {stable_mosaic.version = 11 : i64} {
  func.func @_rows_kernel(%arg0: i32, %arg1: memref<16x16xf32, #tpu.memory_space<vmem>>, %arg2: memref<32x16xf32, #tpu.memory_space<vmem>>, %arg3: memref<32x16xf32, #tpu.memory_space<vmem>>) attributes {dimension_semantics = [#tpu.dimension_semantics<parallel>], iteration_bounds = array<i64: 2>, scalar_prefetch = 0 : i64, scratch_operands = 0 : i64, tpu.core_type = #tpu.core_type<tc>, window_params = [{pipeline_mode = #tpu.pipeline_mode<synchronous>, transform_indices = @transform_0, window_bounds = array<i64: 16, 16>}, {transform_indices = @transform_1, window_bounds = array<i64: 32, 16>}, {transform_indices = @transform_2, window_bounds = array<i64: 32, 16>}]} {
    %c0 = arith.constant 0 : index
    %c0_0 = arith.constant 0 : index
    %0 = vector.load %arg2[%c0, %c0_0] : memref<32x16xf32, #tpu.memory_space<vmem>>, vector<32x16xf32>
    %c0_1 = arith.constant 0 : index
    %c0_2 = arith.constant 0 : index
    %1 = vector.load %arg1[%c0_1, %c0_2] : memref<16x16xf32, #tpu.memory_space<vmem>>, vector<16x16xf32>
    %cst = arith.constant dense<0.000000e+00> : vector<32x16xf32>
    %2 = tpu.matmul %0, %1, %cst {dimension_numbers = #tpu.dot_dimension_numbers<[1], [1], [0], [0], [0, 0, 1, 0], [], []>} : vector<32x16xf32>, vector<16x16xf32>, vector<32x16xf32> -> vector<32x16xf32>
    %c0_3 = arith.constant 0 : index
    %c0_4 = arith.constant 0 : index
    %3 = vector.load %arg3[%c0_3, %c0_4] : memref<32x16xf32, #tpu.memory_space<vmem>>, vector<32x16xf32>
    tpu.vector_store %arg3[%c0_3, %c0_4], %2 {strides = array<i32>} : memref<32x16xf32, #tpu.memory_space<vmem>>, vector<32x16xf32>,
    return
  }
  func.func @transform_0(%arg0: i32) -> (i32, i32) {
    %c0_i32 = arith.constant 0 : i32
    %c0_i32_0 = arith.constant 0 : i32
    %c0_i32_1 = arith.constant 0 : i32
    return %c0_i32, %c0_i32_0 : i32, i32
  }
  func.func @transform_1(%arg0: i32) -> (i32, i32) {
    %c0_i32 = arith.constant 0 : i32
    %c0_i32_0 = arith.constant 0 : i32
    return %arg0, %c0_i32 : i32, i32
  }
  func.func @transform_2(%arg0: i32) -> (i32, i32) {
    %c0_i32 = arith.constant 0 : i32
    %c0_i32_0 = arith.constant 0 : i32
    return %arg0, %c0_i32 : i32, i32
  }
}

</mosaic_0001>

<llo_original>
// kernel: tpu_custom_call.1
$region0: #{tpu_custom_call.1}
  #allocation0 [shape = 'u32[]', space=smem, size = 0x4, offset = 0x4, fixed_abs, tag = 'smem constant byte address 0x4 - core index']
  #allocation1 [shape = 'u32[72,128]{1,0:T(1,128)}', space=vmem, size = 0x9000, scoped, tag = 'internal scratch']
  %s0 = inlined_call_operand.vmem [shape: f32[16,16], index: 0, kind: input, shape index: {}]
  %s1 = inlined_call_operand.vmem [shape: f32[64,16], index: 1, kind: input, shape index: {}]
  %s2 = inlined_call_operand.vmem [shape: f32[64,16], index: 2, kind: output, shape index: {}]
  %s3 = sld [smem:[#allocation0]]
  $region41: #{tpu_custom_call.1} parent=0
    _
  %s5 = ssub.s32 1, %s3
  %s6 = scalar_select 0, %s5, %s3
  loop: start=0, step=1, limit=4
  $region2: #{tpu_custom_call.1} parent=0 // loop_pre_header
    _
  $region3: #{tpu_custom_call.1} parent=0 // loop_header
    %s8 = sphi 0, %s12
    %p9 = scmp.ge.s32.totalorder %s8, 4
    %s16 = sphi 0, %s16
    %s18 = sphi 0, %s16
    %s19 = sphi 0, %s18
    %s33 = sphi 0, %s19
    %s39 = sphi 0, %s41
    %s42 = sphi 0, %s39
    %s43 = sphi 0, %s42
    %s59 = sphi 0, %s43
    %s65 = sphi 0, %s67
    %s68 = sphi 0, %s65
    %s69 = sphi 0, %s68
    %s85 = sphi 0, %s69
  $region4: #{tpu_custom_call.1} parent=0 // loop_header_branch
    %11 = sbr.rel (%p9) target = $region8
  $region5: #{tpu_custom_call.1} parent=0 // loop_body
    %s13 = ssub.s32 %s8, 1
    %s14 = ssub.s32 %s8, 2
    %s15 = sadd.s32 %s8, 1
    %s17 = sadd.s32 %s16, 1
    %p20 = scmp.eq.s32.totalorder %s8, 1
    %p21 = scmp.ne.s32.totalorder %s16, %s18
    %p22 = scmp.eq.s32.totalorder %s8, 0
    %p23 = por %p21, %p22
    %p24 = scmp.ne.s32.totalorder %s16, %s18
    %p25 = scmp.eq.s32.totalorder %s13, 1
    %p26 = por %p24, %p25
    %p27 = scmp.ne.s32.totalorder %s18, %s19
    %p28 = scmp.eq.s32.totalorder %s13, 0
    %p29 = por %p27, %p28
    %p30 = scmp.ne.s32.totalorder %s18, %s19
    %p31 = scmp.eq.s32.totalorder %s14, 1
    %p32 = por %p30, %p31
    %p34 = scmp.ne.s32.totalorder %s19, %s33
    %p35 = scmp.eq.s32.totalorder %s14, 0
    %p36 = por %p34, %p35
    %s37 = ssub.s32 %s8, %s15
    %p38 = scmp.eq.s32.totalorder %s37, 0
    %s40 = sadd.s32 %s39, 1
    %s41 = scalar_select %p38, %s39, %s40
    %p44 = pneg %p38
    %p45 = scmp.eq.s32.totalorder %s8, 1
    %p46 = por %p44, %p45
    %p47 = scmp.ne.s32.totalorder %s39, %s42
    %p48 = scmp.eq.s32.totalorder %s8, 0
    %p49 = por %p47, %p48
    %p50 = scmp.ne.s32.totalorder %s39, %s42
    %p51 = scmp.eq.s32.totalorder %s13, 1
    %p52 = por %p50, %p51
    %p53 = scmp.ne.s32.totalorder %s42, %s43
    %p54 = scmp.eq.s32.totalorder %s13, 0
    %p55 = por %p53, %p54
    %p56 = scmp.ne.s32.totalorder %s42, %s43
    %p57 = scmp.eq.s32.totalorder %s14, 1
    %p58 = por %p56, %p57
    %p60 = scmp.ne.s32.totalorder %s43, %s59
    %p61 = scmp.eq.s32.totalorder %s14, 0
    %p62 = por %p60, %p61
    %s63 = ssub.s32 %s8, %s15
    %p64 = scmp.eq.s32.totalorder %s63, 0
    %s66 = sadd.s32 %s65, 1
    %s67 = scalar_select %p64, %s65, %s66
    %p70 = pneg %p64
    %p71 = scmp.eq.s32.totalorder %s8, 1
    %p72 = por %p70, %p71
    %p73 = scmp.ne.s32.totalorder %s65, %s68
    %p74 = scmp.eq.s32.totalorder %s8, 0
    %p75 = por %p73, %p74
    %p76 = scmp.ne.s32.totalorder %s65, %s68
    %p77 = scmp.eq.s32.totalorder %s13, 1
    %p78 = por %p76, %p77
    %p79 = scmp.ne.s32.totalorder %s68, %s69
    %p80 = scmp.eq.s32.totalorder %s13, 0
    %p81 = por %p79, %p80
    %p82 = scmp.ne.s32.totalorder %s68, %s69
    %p83 = scmp.eq.s32.totalorder %s14, 1
    %p84 = por %p82, %p83
    %p86 = scmp.ne.s32.totalorder %s69, %s85
    %p87 = scmp.eq.s32.totalorder %s14, 0
    %p88 = por %p86, %p87
    %p89 = scmp.le.s32.totalorder 1, %s8
    %p90 = scmp.lt.s32.totalorder %s8, 3
    %p91 = pnand %p89, %p90
    %p92 = pneg %p91
    // Predicated region
    $region9: #{tpu_custom_call.1} parent=5 // pred_check
      _
    $region10: #{tpu_custom_call.1} parent=5 // pred_check_branch
      %94 = sbr.rel (%p91) target = $region12
    $region11: #{tpu_custom_call.1} parent=5 // pred_region
      %s95 = ssub.s32 %s8, 1
      // Predicated region
      $region13: #{tpu_custom_call.1} parent=11 // pred_check
        %p96 = pneg %p29
      $region14: #{tpu_custom_call.1} parent=11 // pred_check_branch
        %98 = sbr.rel (%p96) target = $region16
      $region15: #{tpu_custom_call.1} parent=11 // pred_region
        _
      $region16: #{tpu_custom_call.1} parent=11 // pred_fallthru
        _
    $region12: #{tpu_custom_call.1} parent=5 // pred_fallthru
      _
    %p99 = scmp.lt.s32.totalorder %s8, 2
    // Predicated region
    $region17: #{tpu_custom_call.1} parent=5 // pred_check
      %p100 = pneg %p99
    $region18: #{tpu_custom_call.1} parent=5 // pred_check_branch
      %102 = sbr.rel (%p100) target = $region20
    $region19: #{tpu_custom_call.1} parent=5 // pred_region
      // Predicated region
      $region21: #{tpu_custom_call.1} parent=19 // pred_check
        %p103 = pneg %p49
      $region22: #{tpu_custom_call.1} parent=19 // pred_check_branch
        %105 = sbr.rel (%p103) target = $region24
      $region23: #{tpu_custom_call.1} parent=19 // pred_region
        %s106 = smul.u32 4, %s8
        %p107 = scmp.lt.s32.totalorder %s106, 7
        %s108 = scalar_select %p107, %s106, 7
        %s109 = smul.addr %s108, 8
        %s110 = scalar_lea.vmem %s1, %s109
        %s111 = smul.u32 4, %s8
      $region24: #{tpu_custom_call.1} parent=19 // pred_fallthru
        _
    $region20: #{tpu_custom_call.1} parent=5 // pred_fallthru
      _
    %p112 = scmp.le.s32.totalorder 1, %s8
    %p113 = scmp.lt.s32.totalorder %s8, 3
    %p114 = pnand %p112, %p113
    %p115 = pneg %p114
    // Predicated region
    $region25: #{tpu_custom_call.1} parent=5 // pred_check
      _
    $region26: #{tpu_custom_call.1} parent=5 // pred_check_branch
      %117 = sbr.rel (%p114) target = $region28
    $region27: #{tpu_custom_call.1} parent=5 // pred_region
      %s118 = ssub.s32 %s8, 1
      %p119 = pneg %p29
      %p120 = pneg %p26
      %s121 = smul.u32 4, %s13
      %p122 = scmp.lt.s32.totalorder %s121, 7
      %s123 = scalar_select %p122, %s121, 7
      %s124 = smul.addr %s123, 8
      %s125 = scalar_lea.vmem %s1, %s124
      %p126 = pneg %p55
      %p127 = pneg %p52
      %p128 = pneg %p81
      %p129 = pneg %p78
      %s130 = smul.u32 4, %s13
      %p131 = scmp.lt.s32.totalorder %s130, 7
      %s132 = scalar_select %p131, %s130, 7
      %s133 = smul.addr %s132, 8
      %s134 = scalar_lea.vmem %s2, %s133
      %s135 = smul.u32 4, %s13
      %p136 = scmp.lt.s32.totalorder %s135, 7
      %s137 = scalar_select %p136, %s135, 7
      %s138 = smul.addr %s137, 8
      %s139 = scalar_lea.vmem %s1, %s138
      %s140 = smul.u32 4, %s13
      %s141 = smul.u32 4, %s13
      %p142 = scmp.lt.s32.totalorder %s141, 7
      %s143 = scalar_select %p142, %s141, 7
      %s144 = smul.addr %s143, 8
      %s145 = scalar_lea.vmem %s2, %s144
      %s146 = smul.u32 4, %s13
      %v147 = vld [vmem:[%s139] sm:$0xff]
      %v148 = vld [vmem:[%s139 + $0x8] sm:$0xff]
      %v149 = vld [vmem:[%s139 + $0x10] sm:$0xff]
      %v150 = vld [vmem:[%s139 + $0x18] sm:$0xff]
      %v151 = vld [vmem:[%s0] sm:$0xff]
      %v152 = vld [vmem:[%s0 + $0x8] sm:$0xff]
      %vm153 = vcmask 130048
      %v155 = vsel %vm153, %v147, 0
      %v158 = vsel %vm153, %v148, 0
      %v161 = vsel %vm153, %v149, 0
      %v164 = vsel %vm153, %v150, 0
      %v167 = vsel %vm153, %v151, 0
      %v170 = vsel %vm153, %v152, 0
      %172 = vmatpush.xpose.msra.mxu0 0.0
      %173 = vmatpush.xpose.msra.mxu0 0.0
      %174 = vmatpush.xpose.msra.mxu0 0.0
      %175 = vmatpush.xpose.msra.mxu0 0.0
      %176 = vmatpush.xpose.msra.mxu0 0.0
      %177 = vmatpush.xpose.msra.mxu0 0.0
      %178 = vmatpush.xpose.msra.mxu0 0.0
      %179 = vmatpush.xpose.msra.mxu0 0.0
      %180 = vmatpush.xpose.msra.mxu0 0.0
      %181 = vmatpush.xpose.msra.mxu0 0.0
      %182 = vmatpush.xpose.msra.mxu0 0.0
      %183 = vmatpush.xpose.msra.mxu0 0.0
      %184 = vmatpush.xpose.msra.mxu0 0.0
      %185 = vmatpush.xpose.msra.mxu0 0.0
      %186 = vmatpush.xpose.msra.mxu0 %v170
      %187 = vmatpush.xpose.msra.mxu0 %v167
      %188 = vmatmul.f32.gmra.mxu0 %v155
      %v189 = vpop.f32.mrf.mxu0
      %v190 = vadd.f32 0.0, %v189
      %191 = vmatmul.f32.gmra.mxu0 %v158
      %v192 = vpop.f32.mrf.mxu0
      %v193 = vadd.f32 0.0, %v192
      %194 = vmatmul.f32.gmra.mxu0 %v161
      %v195 = vpop.f32.mrf.mxu0
      %v196 = vadd.f32 0.0, %v195
      %197 = vmatmul.f32.gmra.mxu0 %v164
      %v198 = vpop.f32.mrf.mxu0
      %v199 = vadd.f32 0.0, %v198
      %200 = vdwg.mxu0
      %201 = vst.msk [vmem:[%s145] sm:$0xff] %vm153, %v190
      %202 = vst.msk [vmem:[%s145 + $0x8] sm:$0xff] %vm153, %v193
      %203 = vst.msk [vmem:[%s145 + $0x10] sm:$0xff] %vm153, %v196
      %204 = vst.msk [vmem:[%s145 + $0x18] sm:$0xff] %vm153, %v199
      %s205 = smul.u32 4, %s13
      %p206 = scmp.lt.s32.totalorder %s205, 7
      %s207 = scalar_select %p206, %s205, 7
      %s208 = smul.addr %s207, 8
      %s209 = scalar_lea.vmem %s2, %s208
      // Predicated region
      $region29: #{tpu_custom_call.1} parent=27 // pred_check
        %p210 = pneg %p78
      $region30: #{tpu_custom_call.1} parent=27 // pred_check_branch
        %212 = sbr.rel (%p210) target = $region32
      $region31: #{tpu_custom_call.1} parent=27 // pred_region
        %s213 = smul.u32 4, %s13
      $region32: #{tpu_custom_call.1} parent=27 // pred_fallthru
        _
    $region28: #{tpu_custom_call.1} parent=5 // pred_fallthru
      _
    %p214 = scmp.le.s32.totalorder 2, %s8
    // Predicated region
    $region33: #{tpu_custom_call.1} parent=5 // pred_check
      %p215 = pneg %p214
    $region34: #{tpu_custom_call.1} parent=5 // pred_check_branch
      %217 = sbr.rel (%p215) target = $region36
    $region35: #{tpu_custom_call.1} parent=5 // pred_region
      %s218 = ssub.s32 %s8, 2
      // Predicated region
      $region37: #{tpu_custom_call.1} parent=35 // pred_check
        %p219 = pneg %p84
      $region38: #{tpu_custom_call.1} parent=35 // pred_check_branch
        %221 = sbr.rel (%p219) target = $region40
      $region39: #{tpu_custom_call.1} parent=35 // pred_region
        %s222 = smul.u32 4, %s14
        %p223 = scmp.lt.s32.totalorder %s222, 7
        %s224 = scalar_select %p223, %s222, 7
        %s225 = smul.addr %s224, 8
        %s226 = scalar_lea.vmem %s2, %s225
      $region40: #{tpu_custom_call.1} parent=35 // pred_fallthru
        _
    $region36: #{tpu_custom_call.1} parent=5 // pred_fallthru
      _
  $region6: #{tpu_custom_call.1} parent=0 // loop_footer
    %s12 = sadd.s32 1, %s8
  $region7: #{tpu_custom_call.1} parent=0 // loop_footer_branch
    %7 = sbr.rel target = $region3
  $region8: #{tpu_custom_call.1} parent=0 // loop_exit
    _

</llo_original>
